<compile_context>
chip_gen: v5e
topology: v5e:2x2
jax: 0.10.0
libtpu: 0.0.40
codegen_flags: <defaults>
</compile_context>

<pallas_src>
import functools

import jax
import jax.numpy as jnp
from jax.experimental import pallas as pl
from jax.experimental.pallas import tpu as pltpu


def _round_up(x, m):
    return ((x + m - 1) // m) * m


def _fused_mlp_kernel(*refs, num_layers, mxu_dtype):
    """refs = (x, W0, b0, ..., W_{L-1}, b_{L-1}, out).

    x:    (TM, K)        unpadded-feature input tile
    W_i:  (in_i, out_p)  output dims zero-padded to lane multiples
    b_i:  (1, out_p)     zero-padded, f32
    out:  (TM, Np)       lane-dense output tile
    """
    x_ref = refs[0]
    o_ref = refs[1 + 2 * num_layers]

    cur = x_ref[...]
    for layer in range(num_layers):
        w_ref = refs[1 + 2 * layer]
        b_ref = refs[2 + 2 * layer]
        lhs = cur if mxu_dtype is None else cur.astype(mxu_dtype)
        y = jnp.dot(lhs, w_ref[...], preferred_element_type=jnp.float32)
        y = y + b_ref[...]  # bias + activation stay f32 (v5e has no bf16 VPU)
        if layer < num_layers - 1:
            # Keep the hidden activation as a traced value: no VMEM store/reload.
            cur = jnp.maximum(y, 0.0)
        else:
            o_ref[...] = y.astype(o_ref.dtype)


def _resident_spec(shape):
    """Constant-index (VMEM-resident) block; single-buffered when supported."""
    index_map = lambda i: (0, 0)
    try:
        return pl.BlockSpec(shape, index_map, pipeline_mode=pl.Buffered(1))
    except TypeError:  # older jax without pipeline_mode / Buffered
        return pl.BlockSpec(shape, index_map)


class PallasMLP:
    """Mirror of the PyTorch MLP: num_layers Linear layers, ReLU between."""

    LANE = 128     # lane (feature) alignment for weight output dims / output
    TM_MAX = 512   # max rows per grid step (v6e could go 1024; v7x-safe here)

    def __init__(self, input_dim, hidden_dim, output_dim, num_layers, key,
                 use_bf16=False):
        self.num_layers = num_layers
        self.input_dim = input_dim
        self.output_dim = output_dim
        self.use_bf16 = use_bf16
        # bf16 packs (16,128) sublane tiles; f32 needs (8,128).
        self.sub = 16 if use_bf16 else 8

        h = [hidden_dim] * (num_layers - 1)
        dims_in = [input_dim] + h
        dims_out = h + [output_dim]

        mxu_w_dtype = jnp.bfloat16 if use_bf16 else jnp.float32

        self.params = []          # unpadded (in, out) W + (out,) b  (reference)
        self.padded_params = []   # kernel-side, lane-dense output dims
        for li, (n, k) in enumerate(zip(dims_in, dims_out)):
            key, wk, bk = jax.random.split(key, 3)
            # Deterministic init mimicking nn.Linear's uniform(-1/sqrt(n), 1/sqrt(n)).
            bound = 1.0 / (n ** 0.5)
            # Stored already transposed: (in, out) so the kernel does x @ W.
            w = jax.random.uniform(wk, (n, k), jnp.float32, -bound, bound)
            b = jax.random.uniform(bk, (k,), jnp.float32, -bound, bound)
            self.params.append((w, b))

            # Layer 0 keeps its *unpadded* input dim so x needs no feature pad;
            # hidden layers' input dim matches the previous layer's padded
            # output dim. All output dims are padded to lane multiples so every
            # matmul result and the final store are lane-dense (zero pad = exact).
            n_p = n if li == 0 else _round_up(n, self.LANE)
            k_p = _round_up(k, self.LANE)
            w_p = (jnp.zeros((n_p, k_p), jnp.float32)
                   .at[:n, :k].set(w).astype(mxu_w_dtype))
            b_p = jnp.zeros((1, k_p), jnp.float32).at[0, :k].set(b)
            self.padded_params.append((w_p, b_p))

        self.np_ = _round_up(output_dim, self.LANE)
        self._forward = jax.jit(self._forward_impl)

    def _forward_impl(self, x2d):
        M, K = x2d.shape

        # --- balanced row tiling; guarantee >=2 grid steps when possible so
        # both v7x TensorCores get work (axis is "parallel").
        num_tiles = max(1, pl.cdiv(M, self.TM_MAX))
        if num_tiles == 1 and M > self.sub:
            num_tiles = 2
        TM = _round_up(pl.cdiv(M, num_tiles), self.sub)
        num_tiles = pl.cdiv(M, TM)  # re-derive after sublane rounding

        # --- VMEM residency -> explicit scoped limit (default is 16/32 MiB).
        w_bytes = sum(w.size * w.dtype.itemsize + b.size * b.dtype.itemsize
                      for w, b in self.padded_params)
        io_bytes = 2 * TM * (K + self.np_) * 4     # double-buffered x + out tiles
        # Conservative: count weights double-buffered in case Buffered(1) is
        # unavailable; keep 2 MiB margin for compiler internals.
        vmem_need = 2 * w_bytes + io_bytes + (2 << 20)
        vmem_limit = int(min(max(vmem_need, 32 << 20), 100 << 20))

        kernel = functools.partial(
            _fused_mlp_kernel,
            num_layers=self.num_layers,
            mxu_dtype=jnp.bfloat16 if self.use_bf16 else None,
        )

        in_specs = [pl.BlockSpec((TM, K), lambda i: (i, 0))]
        flat_inputs = [x2d]
        for w_p, b_p in self.padded_params:
            in_specs.append(_resident_spec(w_p.shape))
            in_specs.append(_resident_spec(b_p.shape))
            flat_inputs.extend([w_p, b_p])

        out_p = pl.pallas_call(
            kernel,
            out_shape=jax.ShapeDtypeStruct((M, self.np_), jnp.float32),
            grid=(num_tiles,),
            in_specs=in_specs,
            out_specs=pl.BlockSpec((TM, self.np_), lambda i: (i, 0)),
            compiler_params=pltpu.CompilerParams(
                dimension_semantics=("parallel",),
                vmem_limit_bytes=vmem_limit,
            ),
        )(*flat_inputs)

        return out_p[:, : self.output_dim]

    def __call__(self, x):
        # x: (..., input_dim). Flatten leading dims like PyTorch Linear does.
        lead_shape = x.shape[:-1]
        x2d = x.reshape(-1, x.shape[-1]).astype(jnp.float32)
        if x2d.shape[0] == 0:  # edge case: empty batch
            return jnp.zeros(lead_shape + (self.output_dim,), jnp.float32)
        y2d = self._forward(x2d)
        return y2d.reshape(*lead_shape, self.output_dim)


def _reference_mlp(x, params, num_layers):
    lead_shape = x.shape[:-1]
    y = x.reshape(-1, x.shape[-1])
    for i, (w, b) in enumerate(params):
        y = y @ w + b
        if i < num_layers - 1:
            y = jnp.maximum(y, 0.0)
    return y.reshape(*lead_shape, y.shape[-1])


if __name__ == "__main__":
    key = jax.random.PRNGKey(0)
    key, xkey, pkey = jax.random.split(key, 3)

    # Small shapes consistent with the module's usage (e.g. DETR box head):
    batch, seq = 2, 8
    input_dim, hidden_dim, output_dim, num_layers = 32, 32, 16, 3
    x = jax.random.normal(xkey, (batch, seq, input_dim), dtype=jnp.float32)

    # f32 MXU path by default so the 1e-5 tolerance holds; pass use_bf16=True
    # for large deployments to use the bf16 MXU (keep f32 accumulation).
    mlp = PallasMLP(input_dim, hidden_dim, output_dim, num_layers, pkey)

    out = mlp(x)
    out = jax.block_until_ready(out)

    ref = _reference_mlp(x, mlp.params, num_layers)
    assert out.shape == (batch, seq, output_dim)
    assert jnp.allclose(out, ref, atol=1e-5, rtol=1e-5)

    print("KERNEL_OK")
</pallas_src>

<mosaic_0001>
module attributes {stable_mosaic.version = 11 : i64} {
  func.func @_fused_mlp_kernel(%arg0: i32, %arg1: memref<8x32xf32, #tpu.memory_space<vmem>>, %arg2: memref<32x128xf32, #tpu.memory_space<vmem>>, %arg3: memref<1x128xf32, #tpu.memory_space<vmem>>, %arg4: memref<128x128xf32, #tpu.memory_space<vmem>>, %arg5: memref<1x128xf32, #tpu.memory_space<vmem>>, %arg6: memref<128x128xf32, #tpu.memory_space<vmem>>, %arg7: memref<1x128xf32, #tpu.memory_space<vmem>>, %arg8: memref<8x128xf32, #tpu.memory_space<vmem>>) attributes {dimension_semantics = [#tpu.dimension_semantics<parallel>], iteration_bounds = array<i64: 2>, scalar_prefetch = 0 : i64, scratch_operands = 0 : i64, tpu.core_type = #tpu.core_type<tc>, window_params = [{transform_indices = @transform_0, window_bounds = array<i64: 8, 32>}, {pipeline_mode = #tpu.pipeline_mode<synchronous>, transform_indices = @transform_1, window_bounds = array<i64: 32, 128>}, {pipeline_mode = #tpu.pipeline_mode<synchronous>, transform_indices = @transform_2, window_bounds = array<i64: 1, 128>}, {pipeline_mode = #tpu.pipeline_mode<synchronous>, transform_indices = @transform_3, window_bounds = array<i64: 128, 128>}, {pipeline_mode = #tpu.pipeline_mode<synchronous>, transform_indices = @transform_4, window_bounds = array<i64: 1, 128>}, {pipeline_mode = #tpu.pipeline_mode<synchronous>, transform_indices = @transform_5, window_bounds = array<i64: 128, 128>}, {pipeline_mode = #tpu.pipeline_mode<synchronous>, transform_indices = @transform_6, window_bounds = array<i64: 1, 128>}, {transform_indices = @transform_7, window_bounds = array<i64: 8, 128>}]} {
    %c0 = arith.constant 0 : index
    %c0_0 = arith.constant 0 : index
    %0 = vector.load %arg1[%c0, %c0_0] : memref<8x32xf32, #tpu.memory_space<vmem>>, vector<8x32xf32>
    %c0_1 = arith.constant 0 : index
    %c0_2 = arith.constant 0 : index
    %1 = vector.load %arg2[%c0_1, %c0_2] : memref<32x128xf32, #tpu.memory_space<vmem>>, vector<32x128xf32>
    %cst = arith.constant dense<0.000000e+00> : vector<8x128xf32>
    %2 = tpu.matmul %0, %1, %cst {dimension_numbers = #tpu.dot_dimension_numbers<[1], [0], [0], [1], [0, 0, 1, 1], [], []>} : vector<8x32xf32>, vector<32x128xf32>, vector<8x128xf32> -> vector<8x128xf32>
    %c0_3 = arith.constant 0 : index
    %c0_4 = arith.constant 0 : index
    %3 = vector.load %arg3[%c0_3, %c0_4] : memref<1x128xf32, #tpu.memory_space<vmem>>, vector<1x128xf32>
    %4 = vector.broadcast %3 : vector<1x128xf32> to vector<8x128xf32>
    %5 = arith.addf %2, %4 : vector<8x128xf32>
    %cst_5 = arith.constant 0.000000e+00 : f32
    %6 = vector.broadcast %cst_5 : f32 to vector<8x128xf32>
    %7 = arith.maximumf %5, %6 : vector<8x128xf32>
    %c0_6 = arith.constant 0 : index
    %c0_7 = arith.constant 0 : index
    %8 = vector.load %arg4[%c0_6, %c0_7] : memref<128x128xf32, #tpu.memory_space<vmem>>, vector<128x128xf32>
    %cst_8 = arith.constant dense<0.000000e+00> : vector<8x128xf32>
    %9 = tpu.matmul %7, %8, %cst_8 {dimension_numbers = #tpu.dot_dimension_numbers<[1], [0], [0], [1], [0, 0, 1, 1], [], []>} : vector<8x128xf32>, vector<128x128xf32>, vector<8x128xf32> -> vector<8x128xf32>
    %c0_9 = arith.constant 0 : index
    %c0_10 = arith.constant 0 : index
    %10 = vector.load %arg5[%c0_9, %c0_10] : memref<1x128xf32, #tpu.memory_space<vmem>>, vector<1x128xf32>
    %11 = vector.broadcast %10 : vector<1x128xf32> to vector<8x128xf32>
    %12 = arith.addf %9, %11 : vector<8x128xf32>
    %cst_11 = arith.constant 0.000000e+00 : f32
    %13 = vector.broadcast %cst_11 : f32 to vector<8x128xf32>
    %14 = arith.maximumf %12, %13 : vector<8x128xf32>
    %c0_12 = arith.constant 0 : index
    %c0_13 = arith.constant 0 : index
    %15 = vector.load %arg6[%c0_12, %c0_13] : memref<128x128xf32, #tpu.memory_space<vmem>>, vector<128x128xf32>
    %cst_14 = arith.constant dense<0.000000e+00> : vector<8x128xf32>
    %16 = tpu.matmul %14, %15, %cst_14 {dimension_numbers = #tpu.dot_dimension_numbers<[1], [0], [0], [1], [0, 0, 1, 1], [], []>} : vector<8x128xf32>, vector<128x128xf32>, vector<8x128xf32> -> vector<8x128xf32>
    %c0_15 = arith.constant 0 : index
    %c0_16 = arith.constant 0 : index
    %17 = vector.load %arg7[%c0_15, %c0_16] : memref<1x128xf32, #tpu.memory_space<vmem>>, vector<1x128xf32>
    %18 = vector.broadcast %17 : vector<1x128xf32> to vector<8x128xf32>
    %19 = arith.addf %16, %18 : vector<8x128xf32>
    %c0_17 = arith.constant 0 : index
    %c0_18 = arith.constant 0 : index
    %20 = vector.load %arg8[%c0_17, %c0_18] : memref<8x128xf32, #tpu.memory_space<vmem>>, vector<8x128xf32>
    tpu.vector_store %arg8[%c0_17, %c0_18], %19 {strides = array<i32>} : memref<8x128xf32, #tpu.memory_space<vmem>>, vector<8x128xf32>,
    return
  }
  func.func @transform_0(%arg0: i32) -> (i32, i32) {
    %c0_i32 = arith.constant 0 : i32
    %c0_i32_0 = arith.constant 0 : i32
    return %arg0, %c0_i32 : i32, i32
  }
  func.func @transform_1(%arg0: i32) -> (i32, i32) {
    %c0_i32 = arith.constant 0 : i32
    %c0_i32_0 = arith.constant 0 : i32
    %c0_i32_1 = arith.constant 0 : i32
    return %c0_i32, %c0_i32_0 : i32, i32
  }
  func.func @transform_2(%arg0: i32) -> (i32, i32) {
    %c0_i32 = arith.constant 0 : i32
    %c0_i32_0 = arith.constant 0 : i32
    %c0_i32_1 = arith.constant 0 : i32
    return %c0_i32, %c0_i32_0 : i32, i32
  }
  func.func @transform_3(%arg0: i32) -> (i32, i32) {
    %c0_i32 = arith.constant 0 : i32
    %c0_i32_0 = arith.constant 0 : i32
    %c0_i32_1 = arith.constant 0 : i32
    return %c0_i32, %c0_i32_0 : i32, i32
  }
  func.func @transform_4(%arg0: i32) -> (i32, i32) {
    %c0_i32 = arith.constant 0 : i32
    %c0_i32_0 = arith.constant 0 : i32
    %c0_i32_1 = arith.constant 0 : i32
    return %c0_i32, %c0_i32_0 : i32, i32
  }
  func.func @transform_5(%arg0: i32) -> (i32, i32) {
    %c0_i32 = arith.constant 0 : i32
    %c0_i32_0 = arith.constant 0 : i32
    %c0_i32_1 = arith.constant 0 : i32
    return %c0_i32, %c0_i32_0 : i32, i32
  }
  func.func @transform_6(%arg0: i32) -> (i32, i32) {
    %c0_i32 = arith.constant 0 : i32
    %c0_i32_0 = arith.constant 0 : i32
    %c0_i32_1 = arith.constant 0 : i32
    return %c0_i32, %c0_i32_0 : i32, i32
  }
  func.func @transform_7(%arg0: i32) -> (i32, i32) {
    %c0_i32 = arith.constant 0 : i32
    %c0_i32_0 = arith.constant 0 : i32
    return %arg0, %c0_i32 : i32, i32
  }
}

</mosaic_0001>

<llo_original>
// kernel: _forward_impl.1
$region0: #{_forward_impl.1}
  #allocation0 [shape = 'u32[]', space=smem, size = 0x4, offset = 0x4, fixed_abs, tag = 'smem constant byte address 0x4 - core index']
  #allocation1 [shape = 'u32[72,128]{1,0:T(1,128)}', space=vmem, size = 0x9000, scoped, tag = 'internal scratch']
  %s0 = inlined_call_operand.hbm [shape: f32[16,32], index: 0, kind: input, shape index: {}]
  %s1 = inlined_call_operand.hbm [shape: f32[32,128], index: 1, kind: input, shape index: {}]
  %s2 = inlined_call_operand.hbm [shape: f32[1,128], index: 2, kind: input, shape index: {}]
  %s3 = inlined_call_operand.hbm [shape: f32[128,128], index: 3, kind: input, shape index: {}]
  %s4 = inlined_call_operand.vmem [shape: f32[1,128], index: 4, kind: input, shape index: {}]
  %s5 = inlined_call_operand.hbm [shape: f32[128,128], index: 5, kind: input, shape index: {}]
  %s6 = inlined_call_operand.vmem [shape: f32[1,128], index: 6, kind: input, shape index: {}]
  %s7 = inlined_call_operand.hbm [shape: f32[16,128], index: 7, kind: output, shape index: {}]
  %s8 = sld [smem:[#allocation0]]
  $region81: #{_forward_impl.1} parent=0
    _
  %s10 = ssub.s32 1, %s8
  %s11 = scalar_select 0, %s10, %s8
  $region1: #{_forward_impl.1} parent=0
    #allocation2 [shape = 'u8[8192]{0}', space=vmem, size = 0x2000, scoped, tag = 'input window, operand 0']
    #allocation3 [shape = 's32[2]{0}', space=sflag, size = 0x8, scoped, tag = 'scoped memory for _forward_impl.1']
    #allocation4 [shape = 's32[2]{0}', space=sflag, size = 0x8, scoped, tag = 'scoped memory for _forward_impl.1']
    #allocation5 [shape = 'u8[16384]{0}', space=vmem, size = 0x4000, scoped, tag = 'input window, operand 1, single buffered']
    #allocation6 [shape = 's32[1]{0}', space=sflag, size = 0x4, scoped, tag = 'scoped memory for _forward_impl.1']
    #allocation7 [shape = 'u8[512]{0}', space=vmem, size = 0x400, scoped, tag = 'input window, operand 2, single buffered']
    #allocation8 [shape = 'u8[65536]{0}', space=vmem, size = 0x10000, scoped, tag = 'input window, operand 3, single buffered']
    #allocation9 [shape = 's32[1]{0}', space=sflag, size = 0x4, scoped, tag = 'scoped memory for _forward_impl.1']
    #allocation10 [shape = 'u8[65536]{0}', space=vmem, size = 0x10000, scoped, tag = 'input window, operand 5, single buffered']
    #allocation11 [shape = 'u8[8192]{0}', space=vmem, size = 0x2000, scoped, tag = 'output window, operand 0']
    %12 = vsyncpa [#allocation3], 0
    %s13 = scalar_lea.sflag [#allocation3], 1
    %14 = vsyncpa %s13, 0
    %15 = vsyncpa [#allocation6], 0
    %16 = vsyncpa [#allocation9], 0
    %17 = vsyncpa [#allocation4], 0
    %s18 = scalar_lea.sflag [#allocation4], 1
    %19 = vsyncpa %s18, 0
    loop: start=0, step=1, limit=4
    $region2: #{_forward_impl.1} parent=1 // loop_pre_header
      _
    $region3: #{_forward_impl.1} parent=1 // loop_header
      %s21 = sphi 0, %s25
      %p22 = scmp.ge.s32.totalorder %s21, 4
      %s31 = sphi 0, %s33
      %s34 = sphi 0, %s31
      %s35 = sphi 0, %s34
      %s51 = sphi 0, %s35
      %s55 = sphi 0, %s55
      %s57 = sphi 0, %s55
      %s58 = sphi 0, %s57
      %s72 = sphi 0, %s58
      %s76 = sphi 0, %s76
      %s78 = sphi 0, %s76
      %s79 = sphi 0, %s78
      %s93 = sphi 0, %s79
      %s97 = sphi 0, %s97
      %s99 = sphi 0, %s97
      %s100 = sphi 0, %s99
      %s114 = sphi 0, %s100
      %s118 = sphi 0, %s118
      %s120 = sphi 0, %s118
      %s121 = sphi 0, %s120
      %s135 = sphi 0, %s121
      %s139 = sphi 0, %s139
      %s141 = sphi 0, %s139
      %s142 = sphi 0, %s141
      %s156 = sphi 0, %s142
      %s160 = sphi 0, %s160
      %s162 = sphi 0, %s160
      %s163 = sphi 0, %s162
      %s177 = sphi 0, %s163
      %s183 = sphi 0, %s185
      %s186 = sphi 0, %s183
      %s187 = sphi 0, %s186
      %s203 = sphi 0, %s187
    $region4: #{_forward_impl.1} parent=1 // loop_header_branch
      %24 = sbr.rel (%p22) target = $region8
    $region5: #{_forward_impl.1} parent=1 // loop_body
      %s26 = ssub.s32 %s21, 1
      %s27 = ssub.s32 %s21, 2
      %s28 = sadd.s32 %s21, 1
      %s29 = ssub.s32 %s21, %s28
      %p30 = scmp.eq.s32.totalorder %s29, 0
      %s32 = sadd.s32 %s31, 1
      %s33 = scalar_select %p30, %s31, %s32
      %p36 = pneg %p30
      %p37 = scmp.eq.s32.totalorder %s21, 1
      %p38 = por %p36, %p37
      %p39 = scmp.ne.s32.totalorder %s31, %s34
      %p40 = scmp.eq.s32.totalorder %s21, 0
      %p41 = por %p39, %p40
      %p42 = scmp.ne.s32.totalorder %s31, %s34
      %p43 = scmp.eq.s32.totalorder %s26, 1
      %p44 = por %p42, %p43
      %p45 = scmp.ne.s32.totalorder %s34, %s35
      %p46 = scmp.eq.s32.totalorder %s26, 0
      %p47 = por %p45, %p46
      %p48 = scmp.ne.s32.totalorder %s34, %s35
      %p49 = scmp.eq.s32.totalorder %s27, 1
      %p50 = por %p48, %p49
      %p52 = scmp.ne.s32.totalorder %s35, %s51
      %p53 = scmp.eq.s32.totalorder %s27, 0
      %p54 = por %p52, %p53
      %s56 = sadd.s32 %s55, 1
      %p59 = scmp.eq.s32.totalorder %s21, 1
      %p60 = scmp.ne.s32.totalorder %s55, %s57
      %p61 = scmp.eq.s32.totalorder %s21, 0
      %p62 = por %p60, %p61
      %p63 = scmp.ne.s32.totalorder %s55, %s57
      %p64 = scmp.eq.s32.totalorder %s26, 1
      %p65 = por %p63, %p64
      %p66 = scmp.ne.s32.totalorder %s57, %s58
      %p67 = scmp.eq.s32.totalorder %s26, 0
      %p68 = por %p66, %p67
      %p69 = scmp.ne.s32.totalorder %s57, %s58
      %p70 = scmp.eq.s32.totalorder %s27, 1
      %p71 = por %p69, %p70
      %p73 = scmp.ne.s32.totalorder %s58, %s72
      %p74 = scmp.eq.s32.totalorder %s27, 0
      %p75 = por %p73, %p74
      %s77 = sadd.s32 %s76, 1
      %p80 = scmp.eq.s32.totalorder %s21, 1
      %p81 = scmp.ne.s32.totalorder %s76, %s78
      %p82 = scmp.eq.s32.totalorder %s21, 0
      %p83 = por %p81, %p82
      %p84 = scmp.ne.s32.totalorder %s76, %s78
      %p85 = scmp.eq.s32.totalorder %s26, 1
      %p86 = por %p84, %p85
      %p87 = scmp.ne.s32.totalorder %s78, %s79
      %p88 = scmp.eq.s32.totalorder %s26, 0
      %p89 = por %p87, %p88
      %p90 = scmp.ne.s32.totalorder %s78, %s79
      %p91 = scmp.eq.s32.totalorder %s27, 1
      %p92 = por %p90, %p91
      %p94 = scmp.ne.s32.totalorder %s79, %s93
      %p95 = scmp.eq.s32.totalorder %s27, 0
      %p96 = por %p94, %p95
      %s98 = sadd.s32 %s97, 1
      %p101 = scmp.eq.s32.totalorder %s21, 1
      %p102 = scmp.ne.s32.totalorder %s97, %s99
      %p103 = scmp.eq.s32.totalorder %s21, 0
      %p104 = por %p102, %p103
      %p105 = scmp.ne.s32.totalorder %s97, %s99
      %p106 = scmp.eq.s32.totalorder %s26, 1
      %p107 = por %p105, %p106
      %p108 = scmp.ne.s32.totalorder %s99, %s100
      %p109 = scmp.eq.s32.totalorder %s26, 0
      %p110 = por %p108, %p109
      %p111 = scmp.ne.s32.totalorder %s99, %s100
      %p112 = scmp.eq.s32.totalorder %s27, 1
      %p113 = por %p111, %p112
      %p115 = scmp.ne.s32.totalorder %s100, %s114
      %p116 = scmp.eq.s32.totalorder %s27, 0
      %p117 = por %p115, %p116
      %s119 = sadd.s32 %s118, 1
      %p122 = scmp.eq.s32.totalorder %s21, 1
      %p123 = scmp.ne.s32.totalorder %s118, %s120
      %p124 = scmp.eq.s32.totalorder %s21, 0
      %p125 = por %p123, %p124
      %p126 = scmp.ne.s32.totalorder %s118, %s120
      %p127 = scmp.eq.s32.totalorder %s26, 1
      %p128 = por %p126, %p127
      %p129 = scmp.ne.s32.totalorder %s120, %s121
      %p130 = scmp.eq.s32.totalorder %s26, 0
      %p131 = por %p129, %p130
      %p132 = scmp.ne.s32.totalorder %s120, %s121
      %p133 = scmp.eq.s32.totalorder %s27, 1
      %p134 = por %p132, %p133
      %p136 = scmp.ne.s32.totalorder %s121, %s135
      %p137 = scmp.eq.s32.totalorder %s27, 0
      %p138 = por %p136, %p137
      %s140 = sadd.s32 %s139, 1
      %p143 = scmp.eq.s32.totalorder %s21, 1
      %p144 = scmp.ne.s32.totalorder %s139, %s141
      %p145 = scmp.eq.s32.totalorder %s21, 0
      %p146 = por %p144, %p145
      %p147 = scmp.ne.s32.totalorder %s139, %s141
      %p148 = scmp.eq.s32.totalorder %s26, 1
      %p149 = por %p147, %p148
      %p150 = scmp.ne.s32.totalorder %s141, %s142
      %p151 = scmp.eq.s32.totalorder %s26, 0
      %p152 = por %p150, %p151
      %p153 = scmp.ne.s32.totalorder %s141, %s142
      %p154 = scmp.eq.s32.totalorder %s27, 1
      %p155 = por %p153, %p154
      %p157 = scmp.ne.s32.totalorder %s142, %s156
      %p158 = scmp.eq.s32.totalorder %s27, 0
      %p159 = por %p157, %p158
      %s161 = sadd.s32 %s160, 1
      %p164 = scmp.eq.s32.totalorder %s21, 1
      %p165 = scmp.ne.s32.totalorder %s160, %s162
      %p166 = scmp.eq.s32.totalorder %s21, 0
      %p167 = por %p165, %p166
      %p168 = scmp.ne.s32.totalorder %s160, %s162
      %p169 = scmp.eq.s32.totalorder %s26, 1
      %p170 = por %p168, %p169
      %p171 = scmp.ne.s32.totalorder %s162, %s163
      %p172 = scmp.eq.s32.totalorder %s26, 0
      %p173 = por %p171, %p172
      %p174 = scmp.ne.s32.totalorder %s162, %s163
      %p175 = scmp.eq.s32.totalorder %s27, 1
      %p176 = por %p174, %p175
      %p178 = scmp.ne.s32.totalorder %s163, %s177
      %p179 = scmp.eq.s32.totalorder %s27, 0
      %p180 = por %p178, %p179
      %s181 = ssub.s32 %s21, %s28
      %p182 = scmp.eq.s32.totalorder %s181, 0
      %s184 = sadd.s32 %s183, 1
      %s185 = scalar_select %p182, %s183, %s184
      %p188 = pneg %p182
      %p189 = scmp.eq.s32.totalorder %s21, 1
      %p190 = por %p188, %p189
      %p191 = scmp.ne.s32.totalorder %s183, %s186
      %p192 = scmp.eq.s32.totalorder %s21, 0
      %p193 = por %p191, %p192
      %p194 = scmp.ne.s32.totalorder %s183, %s186
      %p195 = scmp.eq.s32.totalorder %s26, 1
      %p196 = por %p194, %p195
      %p197 = scmp.ne.s32.totalorder %s186, %s187
      %p198 = scmp.eq.s32.totalorder %s26, 0
      %p199 = por %p197, %p198
      %p200 = scmp.ne.s32.totalorder %s186, %s187
      %p201 = scmp.eq.s32.totalorder %s27, 1
      %p202 = por %p200, %p201
      %p204 = scmp.ne.s32.totalorder %s187, %s203
      %p205 = scmp.eq.s32.totalorder %s27, 0
      %p206 = por %p204, %p205
      %p207 = scmp.le.s32.totalorder 1, %s21
      %p208 = scmp.lt.s32.totalorder %s21, 3
      %p209 = pnand %p207, %p208
      %p210 = pneg %p209
      // Predicated region
      $region9: #{_forward_impl.1} parent=5 // pred_check
        _
      $region10: #{_forward_impl.1} parent=5 // pred_check_branch
        %212 = sbr.rel (%p209) target = $region12
      $region11: #{_forward_impl.1} parent=5 // pred_region
        %s213 = ssub.s32 %s21, 1
        // Predicated region
        $region13: #{_forward_impl.1} parent=11 // pred_check
          %p214 = pneg %p68
        $region14: #{_forward_impl.1} parent=11 // pred_check_branch
          %216 = sbr.rel (%p214) target = $region16
        $region15: #{_forward_impl.1} parent=11 // pred_region
          %218 = vsyncadd [#allocation6], 0
          %s219 = sshll.u32 %s1, 4
          %s220 = int_to_ptr.hbm [resolvable:$true] %s219
          %s221 = sshll.u32 [#allocation5], 4
          %s222 = int_to_ptr.vmem [resolvable:$true] %s221
          %227 = dma.hbm_to_vmem [thread:$0]  %s220, 512, %s222, [#allocation6], 128, 128, 8
        $region16: #{_forward_impl.1} parent=11 // pred_fallthru
          _
        // Predicated region
        $region17: #{_forward_impl.1} parent=11 // pred_check
          %p228 = pneg %p89
        $region18: #{_forward_impl.1} parent=11 // pred_check_branch
          %230 = sbr.rel (%p228) target = $region20
        $region19: #{_forward_impl.1} parent=11 // pred_region
          %232 = vsyncadd [#allocation6], 0
          %s234 = sshll.u32 %s2, 4
          %s235 = int_to_ptr.hbm [resolvable:$true] %s234
          %s236 = sshll.u32 [#allocation7], 4
          %s237 = int_to_ptr.vmem [resolvable:$true] %s236
          %239 = dma.hbm_to_vmem [thread:$0]  %s235, 16, %s237, [#allocation6]
        $region20: #{_forward_impl.1} parent=11 // pred_fallthru
          _
        // Predicated region
        $region21: #{_forward_impl.1} parent=11 // pred_check
          %p240 = pneg %p110
        $region22: #{_forward_impl.1} parent=11 // pred_check_branch
          %242 = sbr.rel (%p240) target = $region24
        $region23: #{_forward_impl.1} parent=11 // pred_region
          %244 = vsyncadd [#allocation9], 0
          %s245 = sshll.u32 %s3, 4
          %s246 = int_to_ptr.hbm [resolvable:$true] %s245
          %s247 = sshll.u32 [#allocation8], 4
          %s248 = int_to_ptr.vmem [resolvable:$true] %s247
          %253 = dma.hbm_to_vmem [thread:$0]  %s246, 2048, %s248, [#allocation9], 128, 128, 8
        $region24: #{_forward_impl.1} parent=11 // pred_fallthru
          _
        // Predicated region
        $region25: #{_forward_impl.1} parent=11 // pred_check
          %p254 = pneg %p131
        $region26: #{_forward_impl.1} parent=11 // pred_check_branch
          %256 = sbr.rel (%p254) target = $region28
        $region27: #{_forward_impl.1} parent=11 // pred_region
          _
        $region28: #{_forward_impl.1} parent=11 // pred_fallthru
          _
        // Predicated region
        $region29: #{_forward_impl.1} parent=11 // pred_check
          %p257 = pneg %p152
        $region30: #{_forward_impl.1} parent=11 // pred_check_branch
          %259 = sbr.rel (%p257) target = $region32
        $region31: #{_forward_impl.1} parent=11 // pred_region
          %261 = vsyncadd [#allocation9], 0
          %s262 = sshll.u32 %s5, 4
          %s263 = int_to_ptr.hbm [resolvable:$true] %s262
          %s264 = sshll.u32 [#allocation10], 4
          %s265 = int_to_ptr.vmem [resolvable:$true] %s264
          %270 = dma.hbm_to_vmem [thread:$0]  %s263, 2048, %s265, [#allocation9], 128, 128, 8
        $region32: #{_forward_impl.1} parent=11 // pred_fallthru
          _
        // Predicated region
        $region33: #{_forward_impl.1} parent=11 // pred_check
          %p271 = pneg %p173
        $region34: #{_forward_impl.1} parent=11 // pred_check_branch
          %273 = sbr.rel (%p271) target = $region36
        $region35: #{_forward_impl.1} parent=11 // pred_region
          _
        $region36: #{_forward_impl.1} parent=11 // pred_fallthru
          _
      $region12: #{_forward_impl.1} parent=5 // pred_fallthru
        _
      %p274 = scmp.lt.s32.totalorder %s21, 2
      // Predicated region
      $region37: #{_forward_impl.1} parent=5 // pred_check
        %p275 = pneg %p274
      $region38: #{_forward_impl.1} parent=5 // pred_check_branch
        %277 = sbr.rel (%p275) target = $region40
      $region39: #{_forward_impl.1} parent=5 // pred_region
        // Predicated region
        $region41: #{_forward_impl.1} parent=39 // pred_check
          %p278 = pneg %p41
        $region42: #{_forward_impl.1} parent=39 // pred_check_branch
          %280 = sbr.rel (%p278) target = $region44
        $region43: #{_forward_impl.1} parent=39 // pred_region
          %s281 = sand.u32 %s31, 1
          %s282 = scalar_lea.sflag [#allocation3], %s281
          %s283 = sand.u32 %s31, 1
          %s284 = smul.addr %s283, 8
          %s285 = scalar_lea.vmem [#allocation2], %s284
          %287 = vsyncadd %s282, 0
          %s288 = smul.addr %s21, 8
          %s289 = scalar_lea.hbm %s0, %s288
          %s291 = sshll.u32 %s289, 4
          %s292 = int_to_ptr.hbm [resolvable:$true] %s291
          %s293 = sshll.u32 %s285, 4
          %s294 = int_to_ptr.vmem [resolvable:$true] %s293
          %296 = dma.hbm_to_vmem [thread:$0]  %s292, 128, %s294, %s282
        $region44: #{_forward_impl.1} parent=39 // pred_fallthru
          _
      $region40: #{_forward_impl.1} parent=5 // pred_fallthru
        _
      %p297 = scmp.le.s32.totalorder 1, %s21
      %p298 = scmp.lt.s32.totalorder %s21, 3
      %p299 = pnand %p297, %p298
      %p300 = pneg %p299
      // Predicated region
      $region45: #{_forward_impl.1} parent=5 // pred_check
        _
      $region46: #{_forward_impl.1} parent=5 // pred_check_branch
        %302 = sbr.rel (%p299) target = $region48
      $region47: #{_forward_impl.1} parent=5 // pred_region
        %s303 = ssub.s32 %s21, 1
        %s304 = sand.u32 %s34, 1
        %s305 = scalar_lea.sflag [#allocation3], %s304
        %s306 = sand.u32 %s34, 1
        %s307 = smul.addr %s306, 8
        %s308 = scalar_lea.vmem [#allocation2], %s307
        // Predicated region
        $region49: #{_forward_impl.1} parent=47 // pred_check
          %p309 = pneg %p47
        $region50: #{_forward_impl.1} parent=47 // pred_check_branch
          %311 = sbr.rel (%p309) target = $region52
        $region51: #{_forward_impl.1} parent=47 // pred_region
          %313 = dma.done %s305, 128
        $region52: #{_forward_impl.1} parent=47 // pred_fallthru
          _
        // Predicated region
        $region53: #{_forward_impl.1} parent=47 // pred_check
          %p314 = pneg %p68
        $region54: #{_forward_impl.1} parent=47 // pred_check_branch
          %316 = sbr.rel (%p314) target = $region56
        $region55: #{_forward_impl.1} parent=47 // pred_region
          %318 = dma.done [#allocation6], 512
        $region56: #{_forward_impl.1} parent=47 // pred_fallthru
          _
        // Predicated region
        $region57: #{_forward_impl.1} parent=47 // pred_check
          %p319 = pneg %p89
        $region58: #{_forward_impl.1} parent=47 // pred_check_branch
          %321 = sbr.rel (%p319) target = $region60
        $region59: #{_forward_impl.1} parent=47 // pred_region
          %323 = dma.done [#allocation6], 16
        $region60: #{_forward_impl.1} parent=47 // pred_fallthru
          _
        // Predicated region
        $region61: #{_forward_impl.1} parent=47 // pred_check
          %p324 = pneg %p110
        $region62: #{_forward_impl.1} parent=47 // pred_check_branch
          %326 = sbr.rel (%p324) target = $region64
        $region63: #{_forward_impl.1} parent=47 // pred_region
          %328 = dma.done [#allocation9], 2048
        $region64: #{_forward_impl.1} parent=47 // pred_fallthru
          _
        // Predicated region
        $region65: #{_forward_impl.1} parent=47 // pred_check
          %p329 = pneg %p152
        $region66: #{_forward_impl.1} parent=47 // pred_check_branch
          %331 = sbr.rel (%p329) target = $region68
        $region67: #{_forward_impl.1} parent=47 // pred_region
          %333 = dma.done [#allocation9], 2048
        $region68: #{_forward_impl.1} parent=47 // pred_fallthru
          _
        %s334 = sand.u32 %s34, 1
        %s335 = scalar_lea.sflag [#allocation3], %s334
        %s336 = sand.u32 %s34, 1
        %s337 = smul.addr %s336, 8
        %s338 = scalar_lea.vmem [#allocation2], %s337
        %p339 = pneg %p47
        %p340 = pneg %p44
        %p341 = pneg %p68
        %p342 = pneg %p65
        %p343 = pneg %p89
        %p344 = pneg %p86
        %p345 = pneg %p110
        %p346 = pneg %p107
        %p347 = pneg %p131
        %p348 = pneg %p128
        %p349 = pneg %p152
        %p350 = pneg %p149
        %p351 = pneg %p173
        %p352 = pneg %p170
        %p353 = pneg %p199
        %p354 = pneg %p196
        %s355 = sand.u32 %s186, 1
        %s356 = scalar_lea.sflag [#allocation4], %s355
        %s357 = sand.u32 %s186, 1
        %s358 = smul.addr %s357, 8
        %s359 = scalar_lea.vmem [#allocation11], %s358
        %v360 = vld [vmem:[%s308] sm:$0xff]
        %v361 = vld [vmem:[#allocation5] sm:$0xff]
        %v362 = vld [vmem:[#allocation5 + $0x8] sm:$0xff]
        %v363 = vld [vmem:[#allocation5 + $0x10] sm:$0xff]
        %v364 = vld [vmem:[#allocation5 + $0x18] sm:$0xff]
        %v365 = vld [vmem:[#allocation7] sm:$0x1]
        %v367 = vperm.slane %v365, 0
        %vm369 = vcmask 261120
        %v371 = vsel %vm369, %v360, 0
        %373 = vmatpush.msra.mxu0 0.0
        %374 = vmatpush.msra.mxu0 0.0
        %375 = vmatpush.msra.mxu0 0.0
        %376 = vmatpush.msra.mxu0 0.0
        %377 = vmatpush.msra.mxu0 0.0
        %378 = vmatpush.msra.mxu0 0.0
        %379 = vmatpush.msra.mxu0 0.0
        %380 = vmatpush.msra.mxu0 0.0
        %381 = vmatpush.msra.mxu0 0.0
        %382 = vmatpush.msra.mxu0 0.0
        %383 = vmatpush.msra.mxu0 0.0
        %384 = vmatpush.msra.mxu0 0.0
        %385 = vmatpush.msra.mxu0 %v364
        %386 = vmatpush.msra.mxu0 %v363
        %387 = vmatpush.msra.mxu0 %v362
        %388 = vmatpush.msra.mxu0 %v361
        %389 = vmatmul.f32.gmra.mxu0 %v371
        %v390 = vpop.f32.mrf.mxu0
        %v391 = vadd.f32 %v367, %v390
        %392 = vdwg.mxu0
        %v393 = vmax.f32 %v391, 0.0
        %v394 = vld [vmem:[#allocation8] sm:$0xff]
        %v395 = vld [vmem:[#allocation8 + $0x8] sm:$0xff]
        %v396 = vld [vmem:[#allocation8 + $0x10] sm:$0xff]
        %v397 = vld [vmem:[#allocation8 + $0x18] sm:$0xff]
        %v398 = vld [vmem:[#allocation8 + $0x20] sm:$0xff]
        %v399 = vld [vmem:[#allocation8 + $0x28] sm:$0xff]
        %v400 = vld [vmem:[#allocation8 + $0x30] sm:$0xff]
        %v401 = vld [vmem:[#allocation8 + $0x38] sm:$0xff]
        %v402 = vld [vmem:[#allocation8 + $0x40] sm:$0xff]
        %v403 = vld [vmem:[#allocation8 + $0x48] sm:$0xff]
        %v404 = vld [vmem:[#allocation8 + $0x50] sm:$0xff]
        %v405 = vld [vmem:[#allocation8 + $0x58] sm:$0xff]
        %v406 = vld [vmem:[#allocation8 + $0x60] sm:$0xff]
        %v407 = vld [vmem:[#allocation8 + $0x68] sm:$0xff]
        %v408 = vld [vmem:[#allocation8 + $0x70] sm:$0xff]
        %v409 = vld [vmem:[#allocation8 + $0x78] sm:$0xff]
        %v410 = vld [vmem:[%s4] sm:$0x1]
        %v412 = vperm.slane %v410, 0
        %414 = vmatpush.msra.mxu0 %v409
        %415 = vmatpush.msra.mxu0 %v408
        %416 = vmatpush.msra.mxu0 %v407
        %417 = vmatpush.msra.mxu0 %v406
        %418 = vmatpush.msra.mxu0 %v405
        %419 = vmatpush.msra.mxu0 %v404
        %420 = vmatpush.msra.mxu0 %v403
        %421 = vmatpush.msra.mxu0 %v402
        %422 = vmatpush.msra.mxu0 %v401
        %423 = vmatpush.msra.mxu0 %v400
        %424 = vmatpush.msra.mxu0 %v399
        %425 = vmatpush.msra.mxu0 %v398
        %426 = vmatpush.msra.mxu0 %v397
        %427 = vmatpush.msra.mxu0 %v396
        %428 = vmatpush.msra.mxu0 %v395
        %429 = vmatpush.msra.mxu0 %v394
        %430 = vmatmul.f32.gmra.mxu0 %v393
        %v431 = vpop.f32.mrf.mxu0
        %v432 = vadd.f32 %v412, %v431
        %433 = vdwg.mxu0
        %v434 = vmax.f32 %v432, 0.0
        %v435 = vld [vmem:[#allocation10] sm:$0xff]
        %v436 = vld [vmem:[#allocation10 + $0x8] sm:$0xff]
        %v437 = vld [vmem:[#allocation10 + $0x10] sm:$0xff]
        %v438 = vld [vmem:[#allocation10 + $0x18] sm:$0xff]
        %v439 = vld [vmem:[#allocation10 + $0x20] sm:$0xff]
        %v440 = vld [vmem:[#allocation10 + $0x28] sm:$0xff]
        %v441 = vld [vmem:[#allocation10 + $0x30] sm:$0xff]
        %v442 = vld [vmem:[#allocation10 + $0x38] sm:$0xff]
        %v443 = vld [vmem:[#allocation10 + $0x40] sm:$0xff]
        %v444 = vld [vmem:[#allocation10 + $0x48] sm:$0xff]
        %v445 = vld [vmem:[#allocation10 + $0x50] sm:$0xff]
        %v446 = vld [vmem:[#allocation10 + $0x58] sm:$0xff]
        %v447 = vld [vmem:[#allocation10 + $0x60] sm:$0xff]
        %v448 = vld [vmem:[#allocation10 + $0x68] sm:$0xff]
        %v449 = vld [vmem:[#allocation10 + $0x70] sm:$0xff]
        %v450 = vld [vmem:[#allocation10 + $0x78] sm:$0xff]
        %v451 = vld [vmem:[%s6] sm:$0x1]
        %v453 = vperm.slane %v451, 0
        %455 = vmatpush.msra.mxu0 %v450
        %456 = vmatpush.msra.mxu0 %v449
        %457 = vmatpush.msra.mxu0 %v448
        %458 = vmatpush.msra.mxu0 %v447
        %459 = vmatpush.msra.mxu0 %v446
        %460 = vmatpush.msra.mxu0 %v445
        %461 = vmatpush.msra.mxu0 %v444
        %462 = vmatpush.msra.mxu0 %v443
        %463 = vmatpush.msra.mxu0 %v442
        %464 = vmatpush.msra.mxu0 %v441
        %465 = vmatpush.msra.mxu0 %v440
        %466 = vmatpush.msra.mxu0 %v439
        %467 = vmatpush.msra.mxu0 %v438
        %468 = vmatpush.msra.mxu0 %v437
        %469 = vmatpush.msra.mxu0 %v436
        %470 = vmatpush.msra.mxu0 %v435
        %471 = vmatmul.f32.gmra.mxu0 %v434
        %v472 = vpop.f32.mrf.mxu0
        %v473 = vadd.f32 %v453, %v472
        %474 = vdwg.mxu0
        %475 = vst [vmem:[%s359] sm:$0xff] %v473
        %s476 = sand.u32 %s186, 1
        %s477 = scalar_lea.sflag [#allocation4], %s476
        %s478 = sand.u32 %s186, 1
        %s479 = smul.addr %s478, 8
        %s480 = scalar_lea.vmem [#allocation11], %s479
        // Predicated region
        $region69: #{_forward_impl.1} parent=47 // pred_check
          %p481 = pneg %p196
        $region70: #{_forward_impl.1} parent=47 // pred_check_branch
          %483 = sbr.rel (%p481) target = $region72
        $region71: #{_forward_impl.1} parent=47 // pred_region
          %485 = vsyncadd %s477, 0
          %s486 = smul.addr %s26, 8
          %s487 = scalar_lea.hbm %s7, %s486
          %s489 = sshll.u32 %s480, 4
          %s490 = int_to_ptr.vmem [resolvable:$true] %s489
          %s491 = sshll.u32 %s487, 4
          %s492 = int_to_ptr.hbm [resolvable:$true] %s491
          %494 = dma.vmem_to_hbm [thread:$0]  %s490, 128, %s492, %s477
        $region72: #{_forward_impl.1} parent=47 // pred_fallthru
          _
      $region48: #{_forward_impl.1} parent=5 // pred_fallthru
        _
      %p495 = scmp.le.s32.totalorder 2, %s21
      // Predicated region
      $region73: #{_forward_impl.1} parent=5 // pred_check
        %p496 = pneg %p495
      $region74: #{_forward_impl.1} parent=5 // pred_check_branch
        %498 = sbr.rel (%p496) target = $region76
      $region75: #{_forward_impl.1} parent=5 // pred_region
        %s499 = ssub.s32 %s21, 2
        // Predicated region
        $region77: #{_forward_impl.1} parent=75 // pred_check
          %p500 = pneg %p202
        $region78: #{_forward_impl.1} parent=75 // pred_check_branch
          %502 = sbr.rel (%p500) target = $region80
        $region79: #{_forward_impl.1} parent=75 // pred_region
          %s503 = sand.u32 %s187, 1
          %s504 = scalar_lea.sflag [#allocation4], %s503
          %s505 = sand.u32 %s187, 1
          %s506 = smul.addr %s505, 8
          %s507 = scalar_lea.vmem [#allocation11], %s506
          %509 = dma.done %s504, 128
        $region80: #{_forward_impl.1} parent=75 // pred_fallthru
          _
      $region76: #{_forward_impl.1} parent=5 // pred_fallthru
        _
    $region6: #{_forward_impl.1} parent=1 // loop_footer
      %s25 = sadd.s32 1, %s21
    $region7: #{_forward_impl.1} parent=1 // loop_footer_branch
      %20 = sbr.rel target = $region3
    $region8: #{_forward_impl.1} parent=1 // loop_exit
      _
    %510 = vsyncpa [#allocation3], 1
    %s511 = scalar_lea.sflag [#allocation3], 1
    %512 = vsyncpa %s511, 1
    %513 = vsyncpa [#allocation6], 1
    %514 = vsyncpa [#allocation9], 1
    %515 = vsyncpa [#allocation4], 1
    %s516 = scalar_lea.sflag [#allocation4], 1
    %517 = vsyncpa %s516, 1

</llo_original>
